<compile_context>
chip_gen: v7x
topology: tpu7x:2x2x1
jax: 0.10.0
libtpu: 0.0.40
codegen_flags: <defaults>
</compile_context>

<pallas_src>
import functools

import jax
import jax.numpy as jnp
from jax.experimental import pallas as pl
from jax.experimental.pallas import tpu as pltpu

LANE = 128


def _round_up(n, m):
    return (n + m - 1) // m * m


def _pad2(a, rows, cols):
    r, c = a.shape
    return jnp.pad(a, ((0, rows - r), (0, cols - c)))


# -----------------------------------------------------------------------------
# Single-block fused kernel (whole padded batch in one tile, one launch).
# -----------------------------------------------------------------------------
def _fused_kernel(x_ref, w1cat_ref, b1cat_ref, w22_ref, b22_ref,
                  w12_ref, b12_ref, o_ref, *, b_real, d2_real, h2_pad,
                  h1_real, o1_real):
    x = x_ref[...]

    # Fused first layers of mlp_2 and mlp_1: one wide MXU matmul.
    z = jnp.dot(x, w1cat_ref[...], preferred_element_type=jnp.float32) + b1cat_ref[...]
    z2 = z[:, :h2_pad]          # mlp_2 layer-1 pre-activation
    z1 = z[:, h2_pad:]          # mlp_1 layer-1 pre-activation (un-shifted)

    # mlp_2: ReLU -> Linear ; masked mean over the REAL rows / cols only
    # (padded output cols of W22/b22 are zero, so only rows need masking).
    h2 = jnp.maximum(z2, 0.0)
    pm = jnp.dot(h2, w22_ref[...], preferred_element_type=jnp.float32) + b22_ref[...]
    row = jax.lax.broadcasted_iota(jnp.int32, pm.shape, 0)
    s = jnp.sum(jnp.where(row < b_real, pm, 0.0)) * (1.0 / (b_real * d2_real))

    # mlp_1 with every parameter shifted by s, via  x@(W+s) = x@W + s*rowsum(x).
    colmask_h = (jax.lax.broadcasted_iota(jnp.int32, (1, z1.shape[1]), 1)
                 < h1_real).astype(jnp.float32)
    colmask_o = (jax.lax.broadcasted_iota(jnp.int32, (1, w12_ref.shape[1]), 1)
                 < o1_real).astype(jnp.float32)

    rs_x = jnp.sum(x, axis=-1, keepdims=True)
    h1 = jnp.maximum(z1 + (s * rs_x + s) * colmask_h, 0.0)
    rs_h = jnp.sum(h1, axis=-1, keepdims=True)       # padded h1 cols are exactly 0
    out = (jnp.dot(h1, w12_ref[...], preferred_element_type=jnp.float32)
           + b12_ref[...] + (s * rs_h + s) * colmask_o)
    o_ref[...] = out.astype(o_ref.dtype)


# -----------------------------------------------------------------------------
# Pass 1 (tiled path): accumulate the GLOBAL mean of mlp_2(x) over all tiles.
# -----------------------------------------------------------------------------
def _mlp2_sum_kernel(x_ref, w21_ref, b21_ref, w22_ref, b22_ref, s_ref,
                     *, b_real, d2_real):
    i = pl.program_id(0)

    @pl.when(i == 0)
    def _init():
        s_ref[...] = jnp.zeros_like(s_ref)

    x = x_ref[...]
    h2 = jnp.maximum(
        jnp.dot(x, w21_ref[...], preferred_element_type=jnp.float32) + b21_ref[...],
        0.0)
    pm = jnp.dot(h2, w22_ref[...], preferred_element_type=jnp.float32) + b22_ref[...]
    row = i * x_ref.shape[0] + jax.lax.broadcasted_iota(jnp.int32, pm.shape, 0)
    s_ref[...] += jnp.sum(jnp.where(row < b_real, pm, 0.0))

    @pl.when(i == pl.num_programs(0) - 1)
    def _finalize():
        s_ref[...] *= 1.0 / (b_real * d2_real)


# -----------------------------------------------------------------------------
# Pass 2 (tiled path): shifted mlp_1, batch tiles independent ("parallel").
# -----------------------------------------------------------------------------
def _mlp1_shift_kernel(s_ref, x_ref, w11_ref, b11_ref, w12_ref, b12_ref, o_ref,
                       *, h1_real, o1_real):
    s = s_ref[0, 0]                       # scalar shift, read from SMEM
    x = x_ref[...]
    colmask_h = (jax.lax.broadcasted_iota(jnp.int32, (1, w11_ref.shape[1]), 1)
                 < h1_real).astype(jnp.float32)
    colmask_o = (jax.lax.broadcasted_iota(jnp.int32, (1, w12_ref.shape[1]), 1)
                 < o1_real).astype(jnp.float32)

    rs_x = jnp.sum(x, axis=-1, keepdims=True)
    z1 = jnp.dot(x, w11_ref[...], preferred_element_type=jnp.float32) + b11_ref[...]
    h1 = jnp.maximum(z1 + (s * rs_x + s) * colmask_h, 0.0)
    rs_h = jnp.sum(h1, axis=-1, keepdims=True)
    out = (jnp.dot(h1, w12_ref[...], preferred_element_type=jnp.float32)
           + b12_ref[...] + (s * rs_h + s) * colmask_o)
    o_ref[...] = out.astype(o_ref.dtype)


# -----------------------------------------------------------------------------
# Wrapper: pad/transpose PyTorch-shaped params, pick batch tiling, launch.
# -----------------------------------------------------------------------------
def mlp3_forward(x, params, *, tm=None):
    w11, b11 = params["mlp1_w1"], params["mlp1_b1"]
    w12, b12 = params["mlp1_w2"], params["mlp1_b2"]
    w21, b21 = params["mlp2_w1"], params["mlp2_b1"]
    w22, b22 = params["mlp2_w2"], params["mlp2_b2"]

    B, d_in = x.shape
    h1, _ = w11.shape      # mlp_1: Linear(d_in, h1) -> ReLU -> Linear(h1, o1)
    o1, _ = w12.shape
    h2, _ = w21.shape      # mlp_2: Linear(d_in, h2) -> ReLU -> Linear(h2, o2)
    o2, _ = w22.shape

    f32 = jnp.float32
    dp = _round_up(d_in, LANE)
    h1p, h2p = _round_up(h1, LANE), _round_up(h2, LANE)
    o1p, o2p = _round_up(o1, LANE), _round_up(o2, LANE)

    # PyTorch Linear: y = x @ W.T + b  ->  (in, out) layout, zero-padded to 128.
    W11 = _pad2(w11.T.astype(f32), dp, h1p)
    B11 = _pad2(b11.reshape(1, -1).astype(f32), 1, h1p)
    W12 = _pad2(w12.T.astype(f32), h1p, o1p)
    B12 = _pad2(b12.reshape(1, -1).astype(f32), 1, o1p)
    W21 = _pad2(w21.T.astype(f32), dp, h2p)
    B21 = _pad2(b21.reshape(1, -1).astype(f32), 1, h2p)
    W22 = _pad2(w22.T.astype(f32), h2p, o2p)
    B22 = _pad2(b22.reshape(1, -1).astype(f32), 1, o2p)

    if tm is None:
        tm = min(512, _round_up(B, 8))    # f32 batch tile; fits v7x 32MiB scoped VMEM
    tm = max(8, _round_up(tm, 8))
    bp = _round_up(max(B, tm), tm)
    nb = bp // tm

    xp = jnp.pad(x.astype(f32), ((0, bp - B), (0, dp - d_in)))

    if nb == 1:
        # Whole batch in one block: one launch, fused first-layer matmul.
        w1cat = jnp.concatenate([W21, W11], axis=1)
        b1cat = jnp.concatenate([B21, B11], axis=1)
        args = (xp, w1cat, b1cat, W22, B22, W12, B12)
        kernel = functools.partial(_fused_kernel, b_real=B, d2_real=o2,
                                   h2_pad=h2p, h1_real=h1, o1_real=o1)
        full = lambda a: pl.BlockSpec(a.shape, lambda: (0,) * a.ndim)
        out = pl.pallas_call(
            kernel,
            out_shape=jax.ShapeDtypeStruct((bp, o1p), f32),
            in_specs=[full(a) for a in args],
            out_specs=pl.BlockSpec((bp, o1p), lambda: (0, 0)),
        )(*args)
        return out[:B, :o1]

    # ---- pass 1: global mean of mlp_2(x) (reduction over all batch tiles) ----
    resident = lambda a: pl.BlockSpec(a.shape, lambda i: (0,) * a.ndim)
    s_arr = pl.pallas_call(
        functools.partial(_mlp2_sum_kernel, b_real=B, d2_real=o2),
        out_shape=jax.ShapeDtypeStruct((1, 1), f32),
        grid=(nb,),
        in_specs=[pl.BlockSpec((tm, dp), lambda i: (i, 0)),
                  resident(W21), resident(B21), resident(W22), resident(B22)],
        out_specs=pl.BlockSpec((1, 1), lambda i: (0, 0)),
        compiler_params=pltpu.CompilerParams(dimension_semantics=("arbitrary",)),
    )(xp, W21, B21, W22, B22)

    # ---- pass 2: shifted mlp_1, batch-tiled and parallel across TCs ----
    out = pl.pallas_call(
        functools.partial(_mlp1_shift_kernel, h1_real=h1, o1_real=o1),
        out_shape=jax.ShapeDtypeStruct((bp, o1p), f32),
        grid=(nb,),
        in_specs=[pl.BlockSpec(memory_space=pltpu.MemorySpace.SMEM),
                  pl.BlockSpec((tm, dp), lambda i: (i, 0)),
                  resident(W11), resident(B11), resident(W12), resident(B12)],
        out_specs=pl.BlockSpec((tm, o1p), lambda i: (i, 0)),
        compiler_params=pltpu.CompilerParams(dimension_semantics=("parallel",)),
    )(s_arr, xp, W11, B11, W12, B12)
    return out[:B, :o1]


# -----------------------------------------------------------------------------
# Pure-JAX reference + test harness
# -----------------------------------------------------------------------------
def reference_forward(x, p):
    h2 = jnp.maximum(x @ p["mlp2_w1"].T + p["mlp2_b1"], 0.0)
    pm = h2 @ p["mlp2_w2"].T + p["mlp2_b2"]
    s = pm.mean()
    h1 = jnp.maximum(x @ (p["mlp1_w1"] + s).T + (p["mlp1_b1"] + s), 0.0)
    return h1 @ (p["mlp1_w2"] + s).T + (p["mlp1_b2"] + s)


def make_params(key, d_in, h1, d_out1, h2, d_out2):
    ks = jax.random.split(key, 8)
    return {
        "mlp1_w1": jax.random.normal(ks[0], (h1, d_in), jnp.float32) * 0.1,
        "mlp1_b1": jax.random.normal(ks[1], (h1,), jnp.float32) * 0.1,
        "mlp1_w2": jax.random.normal(ks[2], (d_out1, h1), jnp.float32) * 0.1,
        "mlp1_b2": jax.random.normal(ks[3], (d_out1,), jnp.float32) * 0.1,
        "mlp2_w1": jax.random.normal(ks[4], (h2, d_in), jnp.float32) * 0.1,
        "mlp2_b1": jax.random.normal(ks[5], (h2,), jnp.float32) * 0.1,
        "mlp2_w2": jax.random.normal(ks[6], (d_out2, h2), jnp.float32) * 0.1,
        "mlp2_b2": jax.random.normal(ks[7], (d_out2,), jnp.float32) * 0.1,
    }


if __name__ == "__main__":
    key = jax.random.PRNGKey(0)
    k1, k2, k3, k4 = jax.random.split(key, 4)

    # Case 1: tiny shapes -> single fused launch (nb == 1).
    B, D_IN, H1, D_OUT1, H2, D_OUT2 = 8, 16, 32, 16, 32, 16
    x = jax.random.normal(k1, (B, D_IN), jnp.float32)
    params = make_params(k2, D_IN, H1, D_OUT1, H2, D_OUT2)
    out = jax.block_until_ready(mlp3_forward(x, params))
    ref = reference_forward(x, params)
    assert out.shape == ref.shape == (B, D_OUT1)
    assert jnp.allclose(out, ref, atol=1e-4, rtol=1e-4), \
        float(jnp.max(jnp.abs(out - ref)))

    # Case 2: batch-tiled two-pass path (global mean across tiles, padded rows).
    B2, D_IN2, H1b, D_OUT1b, H2b, D_OUT2b = 40, 24, 48, 20, 40, 12
    x2 = jax.random.normal(k3, (B2, D_IN2), jnp.float32)
    params2 = make_params(k4, D_IN2, H1b, D_OUT1b, H2b, D_OUT2b)
    out2 = jax.block_until_ready(mlp3_forward(x2, params2, tm=16))
    ref2 = reference_forward(x2, params2)
    assert out2.shape == ref2.shape == (B2, D_OUT1b)
    assert jnp.allclose(out2, ref2, atol=1e-4, rtol=1e-4), \
        float(jnp.max(jnp.abs(out2 - ref2)))

    print("KERNEL_OK")
</pallas_src>

<mosaic_0001>
module attributes {stable_mosaic.version = 11 : i64} {
  func.func @_fused_kernel(%arg0: memref<8x128xf32, #tpu.memory_space<vmem>>, %arg1: memref<128x256xf32, #tpu.memory_space<vmem>>, %arg2: memref<1x256xf32, #tpu.memory_space<vmem>>, %arg3: memref<128x128xf32, #tpu.memory_space<vmem>>, %arg4: memref<1x128xf32, #tpu.memory_space<vmem>>, %arg5: memref<128x128xf32, #tpu.memory_space<vmem>>, %arg6: memref<1x128xf32, #tpu.memory_space<vmem>>, %arg7: memref<8x128xf32, #tpu.memory_space<vmem>>) attributes {dimension_semantics = [], scalar_prefetch = 0 : i64, scratch_operands = 0 : i64, tpu.core_type = #tpu.core_type<tc>} {
    %c0 = arith.constant 0 : index
    %c0_0 = arith.constant 0 : index
    %0 = vector.load %arg0[%c0, %c0_0] : memref<8x128xf32, #tpu.memory_space<vmem>>, vector<8x128xf32>
    %c0_1 = arith.constant 0 : index
    %c0_2 = arith.constant 0 : index
    %1 = vector.load %arg1[%c0_1, %c0_2] : memref<128x256xf32, #tpu.memory_space<vmem>>, vector<128x256xf32>
    %cst = arith.constant dense<0.000000e+00> : vector<8x256xf32>
    %2 = tpu.matmul %0, %1, %cst {dimension_numbers = #tpu.dot_dimension_numbers<[1], [0], [0], [1], [0, 0, 1, 1], [], []>} : vector<8x128xf32>, vector<128x256xf32>, vector<8x256xf32> -> vector<8x256xf32>
    %c0_3 = arith.constant 0 : index
    %c0_4 = arith.constant 0 : index
    %3 = vector.load %arg2[%c0_3, %c0_4] : memref<1x256xf32, #tpu.memory_space<vmem>>, vector<1x256xf32>
    %4 = vector.broadcast %3 : vector<1x256xf32> to vector<8x256xf32>
    %5 = arith.addf %2, %4 : vector<8x256xf32>
    %6 = vector.extract_strided_slice %5 {offsets = [0, 0], sizes = [8, 128], strides = [1, 1]} : vector<8x256xf32> to vector<8x128xf32>
    %7 = vector.extract_strided_slice %5 {offsets = [0, 128], sizes = [8, 128], strides = [1, 1]} : vector<8x256xf32> to vector<8x128xf32>
    %cst_5 = arith.constant 0.000000e+00 : f32
    %8 = vector.broadcast %cst_5 : f32 to vector<8x128xf32>
    %9 = arith.maximumf %6, %8 : vector<8x128xf32>
    %c0_6 = arith.constant 0 : index
    %c0_7 = arith.constant 0 : index
    %10 = vector.load %arg3[%c0_6, %c0_7] : memref<128x128xf32, #tpu.memory_space<vmem>>, vector<128x128xf32>
    %cst_8 = arith.constant dense<0.000000e+00> : vector<8x128xf32>
    %11 = tpu.matmul %9, %10, %cst_8 {dimension_numbers = #tpu.dot_dimension_numbers<[1], [0], [0], [1], [0, 0, 1, 1], [], []>} : vector<8x128xf32>, vector<128x128xf32>, vector<8x128xf32> -> vector<8x128xf32>
    %c0_9 = arith.constant 0 : index
    %c0_10 = arith.constant 0 : index
    %12 = vector.load %arg4[%c0_9, %c0_10] : memref<1x128xf32, #tpu.memory_space<vmem>>, vector<1x128xf32>
    %13 = vector.broadcast %12 : vector<1x128xf32> to vector<8x128xf32>
    %14 = arith.addf %11, %13 : vector<8x128xf32>
    %15 = tpu.iota {dimensions = array<i32: 0>} : vector<8x128xi32>
    %c8_i32 = arith.constant 8 : i32
    %16 = vector.broadcast %c8_i32 : i32 to vector<8x128xi32>
    %17 = arith.cmpi slt, %15, %16 : vector<8x128xi32>
    %cst_11 = arith.constant 0.000000e+00 : f32
    %18 = vector.broadcast %cst_11 : f32 to vector<8x128xf32>
    %19 = arith.select %17, %14, %18 : vector<8x128xi1>, vector<8x128xf32>
    %20 = vector.shape_cast %19 : vector<8x128xf32> to vector<1x8x128xf32>
    %cst_12 = arith.constant dense<0.000000e+00> : vector<1xf32>
    %21 = vector.multi_reduction <add>, %20, %cst_12 [1, 2] : vector<1x8x128xf32> to vector<1xf32>
    %22 = vector.shape_cast %21 : vector<1xf32> to vector<1x1x1xf32>
    %23 = vector.extract %22[0, 0, 0] : f32 from vector<1x1x1xf32>
    %cst_13 = arith.constant 7.812500e-03 : f32
    %24 = arith.mulf %23, %cst_13 : f32
    %25 = tpu.iota {dimensions = array<i32: 1>} : vector<1x128xi32>
    %c32_i32 = arith.constant 32 : i32
    %26 = vector.broadcast %c32_i32 : i32 to vector<1x128xi32>
    %27 = arith.cmpi slt, %25, %26 : vector<1x128xi32>
    %28 = arith.extui %27 : vector<1x128xi1> to vector<1x128xi32>
    %29 = arith.sitofp %28 : vector<1x128xi32> to vector<1x128xf32>
    %30 = tpu.iota {dimensions = array<i32: 1>} : vector<1x128xi32>
    %c16_i32 = arith.constant 16 : i32
    %31 = vector.broadcast %c16_i32 : i32 to vector<1x128xi32>
    %32 = arith.cmpi slt, %30, %31 : vector<1x128xi32>
    %33 = arith.extui %32 : vector<1x128xi1> to vector<1x128xi32>
    %34 = arith.sitofp %33 : vector<1x128xi32> to vector<1x128xf32>
    %cst_14 = arith.constant dense<0.000000e+00> : vector<8xf32>
    %35 = vector.multi_reduction <add>, %0, %cst_14 [1] : vector<8x128xf32> to vector<8xf32>
    %36 = vector.shape_cast %35 : vector<8xf32> to vector<8x1xf32>
    %37 = vector.broadcast %24 : f32 to vector<8x1xf32>
    %38 = arith.mulf %37, %36 : vector<8x1xf32>
    %39 = vector.broadcast %24 : f32 to vector<8x1xf32>
    %40 = arith.addf %38, %39 : vector<8x1xf32>
    %41 = vector.broadcast %40 : vector<8x1xf32> to vector<8x128xf32>
    %42 = vector.broadcast %29 : vector<1x128xf32> to vector<8x128xf32>
    %43 = arith.mulf %41, %42 : vector<8x128xf32>
    %44 = arith.addf %7, %43 : vector<8x128xf32>
    %cst_15 = arith.constant 0.000000e+00 : f32
    %45 = vector.broadcast %cst_15 : f32 to vector<8x128xf32>
    %46 = arith.maximumf %44, %45 : vector<8x128xf32>
    %cst_16 = arith.constant dense<0.000000e+00> : vector<8xf32>
    %47 = vector.multi_reduction <add>, %46, %cst_16 [1] : vector<8x128xf32> to vector<8xf32>
    %48 = vector.shape_cast %47 : vector<8xf32> to vector<8x1xf32>
    %c0_17 = arith.constant 0 : index
    %c0_18 = arith.constant 0 : index
    %49 = vector.load %arg5[%c0_17, %c0_18] : memref<128x128xf32, #tpu.memory_space<vmem>>, vector<128x128xf32>
    %cst_19 = arith.constant dense<0.000000e+00> : vector<8x128xf32>
    %50 = tpu.matmul %46, %49, %cst_19 {dimension_numbers = #tpu.dot_dimension_numbers<[1], [0], [0], [1], [0, 0, 1, 1], [], []>} : vector<8x128xf32>, vector<128x128xf32>, vector<8x128xf32> -> vector<8x128xf32>
    %c0_20 = arith.constant 0 : index
    %c0_21 = arith.constant 0 : index
    %51 = vector.load %arg6[%c0_20, %c0_21] : memref<1x128xf32, #tpu.memory_space<vmem>>, vector<1x128xf32>
    %52 = vector.broadcast %51 : vector<1x128xf32> to vector<8x128xf32>
    %53 = arith.addf %50, %52 : vector<8x128xf32>
    %54 = vector.broadcast %24 : f32 to vector<8x1xf32>
    %55 = arith.mulf %54, %48 : vector<8x1xf32>
    %56 = vector.broadcast %24 : f32 to vector<8x1xf32>
    %57 = arith.addf %55, %56 : vector<8x1xf32>
    %58 = vector.broadcast %57 : vector<8x1xf32> to vector<8x128xf32>
    %59 = vector.broadcast %34 : vector<1x128xf32> to vector<8x128xf32>
    %60 = arith.mulf %58, %59 : vector<8x128xf32>
    %61 = arith.addf %53, %60 : vector<8x128xf32>
    %c0_22 = arith.constant 0 : index
    %c0_23 = arith.constant 0 : index
    %62 = vector.load %arg7[%c0_22, %c0_23] : memref<8x128xf32, #tpu.memory_space<vmem>>, vector<8x128xf32>
    tpu.vector_store %arg7[%c0_22, %c0_23], %61 {strides = array<i32>} : memref<8x128xf32, #tpu.memory_space<vmem>>, vector<8x128xf32>,
    return
  }
}

</mosaic_0001>

<llo_original>
// kernel: tpu_custom_call.1
$region0: #{tpu_custom_call.1}
  #allocation0 [shape = 'u32[]', space=smem, size = 0x4, offset = 0x4, fixed_abs, tag = 'smem constant byte address 0x4 - core index']
  #allocation1 [shape = 'u32[144,128]{1,0:T(1,128)}', space=vmem, size = 0x12000, scoped, tag = 'internal scratch']
  %s0 = inlined_call_operand.hbm [shape: f32[8,128], index: 0, kind: input, shape index: {}]
  %s1 = inlined_call_operand.hbm [shape: f32[128,256], index: 1, kind: input, shape index: {}]
  %s2 = inlined_call_operand.vmem [shape: f32[1,256], index: 2, kind: input, shape index: {}]
  %s3 = inlined_call_operand.hbm [shape: f32[128,128], index: 3, kind: input, shape index: {}]
  %s4 = inlined_call_operand.vmem [shape: f32[1,128], index: 4, kind: input, shape index: {}]
  %s5 = inlined_call_operand.hbm [shape: f32[128,128], index: 5, kind: input, shape index: {}]
  %s6 = inlined_call_operand.vmem [shape: f32[1,128], index: 6, kind: input, shape index: {}]
  %s7 = inlined_call_operand.hbm [shape: f32[8,128], index: 7, kind: output, shape index: {}]
  %s8 = sld [smem:[#allocation0]]
  $region54: #{tpu_custom_call.1} parent=0
    _
  %s10 = ssub.s32 1, %s8
  %s11 = scalar_select 0, %s10, %s8
  $region1: #{tpu_custom_call.1} parent=0
    #allocation2 [shape = 'u8[4096]{0}', space=vmem, size = 0x1000, scoped, tag = 'input window, operand 0, single buffered']
    #allocation3 [shape = 's32[1]{0}', space=sflag, size = 0x4, scoped, tag = 'scoped memory for tpu_custom_call.1']
    #allocation4 [shape = 's32[1]{0}', space=sflag, size = 0x4, scoped, tag = 'scoped memory for tpu_custom_call.1']
    #allocation5 [shape = 'u8[131072]{0}', space=vmem, size = 0x20000, scoped, tag = 'input window, operand 1, single buffered']
    #allocation6 [shape = 's32[1]{0}', space=sflag, size = 0x4, scoped, tag = 'scoped memory for tpu_custom_call.1']
    #allocation7 [shape = 'u8[65536]{0}', space=vmem, size = 0x10000, scoped, tag = 'input window, operand 3, single buffered']
    #allocation8 [shape = 'u8[65536]{0}', space=vmem, size = 0x10000, scoped, tag = 'input window, operand 5, single buffered']
    #allocation9 [shape = 's32[1]{0}', space=sflag, size = 0x4, scoped, tag = 'scoped memory for tpu_custom_call.1']
    #allocation10 [shape = 'u8[4096]{0}', space=vmem, size = 0x1000, scoped, tag = 'output window, operand 0, single buffered']
    %12 = vsyncpa [#allocation3], 0
    %13 = vsyncpa [#allocation6], 0
    %14 = vsyncpa [#allocation9], 0
    %15 = vsyncpa [#allocation4], 0
    // Predicated region
    $region2: #{tpu_custom_call.1} parent=1 // pred_check
      _
    $region3: #{tpu_custom_call.1} parent=1 // pred_check_branch
      %17 = sbr.rel (0) target = $region5
    $region4: #{tpu_custom_call.1} parent=1 // pred_region
      %s19 = ssub.s32 128, 128
      %20 = vsyncadd [#allocation3], %s19
      %s22 = sshll.u32 [#allocation2], 4
      %s23 = int_to_ptr.vmem [resolvable:$true] %s22
      %25 = dma.hbm_to_vmem [thread:$0]  %s0, 128, %s23, [#allocation3]
    $region5: #{tpu_custom_call.1} parent=1 // pred_fallthru
      _
    // Predicated region
    $region6: #{tpu_custom_call.1} parent=1 // pred_check
      _
    $region7: #{tpu_custom_call.1} parent=1 // pred_check_branch
      %27 = sbr.rel (0) target = $region9
    $region8: #{tpu_custom_call.1} parent=1 // pred_region
      %s29 = ssub.s32 4096, 4096
      %30 = vsyncadd [#allocation6], %s29
      %s31 = sshll.u32 [#allocation5], 4
      %s32 = int_to_ptr.vmem [resolvable:$true] %s31
      %37 = dma.hbm_to_vmem [thread:$0]  %s1, 4096, %s32, [#allocation6], 256, 256, 16
    $region9: #{tpu_custom_call.1} parent=1 // pred_fallthru
      _
    // Predicated region
    $region10: #{tpu_custom_call.1} parent=1 // pred_check
      _
    $region11: #{tpu_custom_call.1} parent=1 // pred_check_branch
      %39 = sbr.rel (0) target = $region13
    $region12: #{tpu_custom_call.1} parent=1 // pred_region
      _
    $region13: #{tpu_custom_call.1} parent=1 // pred_fallthru
      _
    // Predicated region
    $region14: #{tpu_custom_call.1} parent=1 // pred_check
      _
    $region15: #{tpu_custom_call.1} parent=1 // pred_check_branch
      %41 = sbr.rel (0) target = $region17
    $region16: #{tpu_custom_call.1} parent=1 // pred_region
      %s43 = ssub.s32 2048, 2048
      %44 = vsyncadd [#allocation6], %s43
      %s45 = sshll.u32 [#allocation7], 4
      %s46 = int_to_ptr.vmem [resolvable:$true] %s45
      %51 = dma.hbm_to_vmem [thread:$0]  %s3, 2048, %s46, [#allocation6], 128, 128, 8
    $region17: #{tpu_custom_call.1} parent=1 // pred_fallthru
      _
    // Predicated region
    $region18: #{tpu_custom_call.1} parent=1 // pred_check
      _
    $region19: #{tpu_custom_call.1} parent=1 // pred_check_branch
      %53 = sbr.rel (0) target = $region21
    $region20: #{tpu_custom_call.1} parent=1 // pred_region
      _
    $region21: #{tpu_custom_call.1} parent=1 // pred_fallthru
      _
    // Predicated region
    $region22: #{tpu_custom_call.1} parent=1 // pred_check
      _
    $region23: #{tpu_custom_call.1} parent=1 // pred_check_branch
      %55 = sbr.rel (0) target = $region25
    $region24: #{tpu_custom_call.1} parent=1 // pred_region
      %s57 = ssub.s32 2048, 2048
      %58 = vsyncadd [#allocation9], %s57
      %s59 = sshll.u32 [#allocation8], 4
      %s60 = int_to_ptr.vmem [resolvable:$true] %s59
      %65 = dma.hbm_to_vmem [thread:$0]  %s5, 2048, %s60, [#allocation9], 128, 128, 8
    $region25: #{tpu_custom_call.1} parent=1 // pred_fallthru
      _
    // Predicated region
    $region26: #{tpu_custom_call.1} parent=1 // pred_check
      _
    $region27: #{tpu_custom_call.1} parent=1 // pred_check_branch
      %67 = sbr.rel (0) target = $region29
    $region28: #{tpu_custom_call.1} parent=1 // pred_region
      _
    $region29: #{tpu_custom_call.1} parent=1 // pred_fallthru
      _
    // Predicated region
    $region30: #{tpu_custom_call.1} parent=1 // pred_check
      _
    $region31: #{tpu_custom_call.1} parent=1 // pred_check_branch
      %69 = sbr.rel (0) target = $region33
    $region32: #{tpu_custom_call.1} parent=1 // pred_region
      %70 = dma.done [#allocation3], 128
    $region33: #{tpu_custom_call.1} parent=1 // pred_fallthru
      _
    // Predicated region
    $region34: #{tpu_custom_call.1} parent=1 // pred_check
      _
    $region35: #{tpu_custom_call.1} parent=1 // pred_check_branch
      %72 = sbr.rel (0) target = $region37
    $region36: #{tpu_custom_call.1} parent=1 // pred_region
      %73 = dma.done [#allocation6], 4096
    $region37: #{tpu_custom_call.1} parent=1 // pred_fallthru
      _
    // Predicated region
    $region38: #{tpu_custom_call.1} parent=1 // pred_check
      _
    $region39: #{tpu_custom_call.1} parent=1 // pred_check_branch
      %75 = sbr.rel (0) target = $region41
    $region40: #{tpu_custom_call.1} parent=1 // pred_region
      %76 = dma.done [#allocation6], 2048
    $region41: #{tpu_custom_call.1} parent=1 // pred_fallthru
      _
    // Predicated region
    $region42: #{tpu_custom_call.1} parent=1 // pred_check
      _
    $region43: #{tpu_custom_call.1} parent=1 // pred_check_branch
      %78 = sbr.rel (0) target = $region45
    $region44: #{tpu_custom_call.1} parent=1 // pred_region
      %79 = dma.done [#allocation9], 2048
    $region45: #{tpu_custom_call.1} parent=1 // pred_fallthru
      _
    %v80 = vld [vmem:[#allocation2] sm:$0xff]
    %v81 = vld [vmem:[#allocation5] sm:$0xff]
    %v82 = vld [vmem:[#allocation5 + $0x8] sm:$0xff]
    %v83 = vld [vmem:[#allocation5 + $0x10] sm:$0xff]
    %v84 = vld [vmem:[#allocation5 + $0x18] sm:$0xff]
    %v85 = vld [vmem:[#allocation5 + $0x20] sm:$0xff]
    %v86 = vld [vmem:[#allocation5 + $0x28] sm:$0xff]
    %v87 = vld [vmem:[#allocation5 + $0x30] sm:$0xff]
    %v88 = vld [vmem:[#allocation5 + $0x38] sm:$0xff]
    %v89 = vld [vmem:[#allocation5 + $0x40] sm:$0xff]
    %v90 = vld [vmem:[#allocation5 + $0x48] sm:$0xff]
    %v91 = vld [vmem:[#allocation5 + $0x50] sm:$0xff]
    %v92 = vld [vmem:[#allocation5 + $0x58] sm:$0xff]
    %v93 = vld [vmem:[#allocation5 + $0x60] sm:$0xff]
    %v94 = vld [vmem:[#allocation5 + $0x68] sm:$0xff]
    %v95 = vld [vmem:[#allocation5 + $0x70] sm:$0xff]
    %v96 = vld [vmem:[#allocation5 + $0x78] sm:$0xff]
    %v97 = vld [vmem:[#allocation5 + $0x80] sm:$0xff]
    %v98 = vld [vmem:[#allocation5 + $0x88] sm:$0xff]
    %v99 = vld [vmem:[#allocation5 + $0x90] sm:$0xff]
    %v100 = vld [vmem:[#allocation5 + $0x98] sm:$0xff]
    %v101 = vld [vmem:[#allocation5 + $0xa0] sm:$0xff]
    %v102 = vld [vmem:[#allocation5 + $0xa8] sm:$0xff]
    %v103 = vld [vmem:[#allocation5 + $0xb0] sm:$0xff]
    %v104 = vld [vmem:[#allocation5 + $0xb8] sm:$0xff]
    %v105 = vld [vmem:[#allocation5 + $0xc0] sm:$0xff]
    %v106 = vld [vmem:[#allocation5 + $0xc8] sm:$0xff]
    %v107 = vld [vmem:[#allocation5 + $0xd0] sm:$0xff]
    %v108 = vld [vmem:[#allocation5 + $0xd8] sm:$0xff]
    %v109 = vld [vmem:[#allocation5 + $0xe0] sm:$0xff]
    %v110 = vld [vmem:[#allocation5 + $0xe8] sm:$0xff]
    %v111 = vld [vmem:[#allocation5 + $0xf0] sm:$0xff]
    %v112 = vld [vmem:[#allocation5 + $0xf8] sm:$0xff]
    %v113 = vld [vmem:[%s2] sm:$0x3]
    %v115 = vlaneseq
    %v116 = vshrl.u32 %v115, 7
    %v117 = vsub.s32 0, %v116
    %v118 = vrot.slane %v113, %v117
    %v119 = vlaneseq
    %v120 = vshrl.u32 %v119, 7
    %v121 = vsub.s32 1, %v120
    %v122 = vrot.slane %v113, %v121
    %125 = vmatprep.subr.mxu0 %v82
    %126 = vmatpush1.msra.mxu0 %v81
    %127 = vmatprep.subr.mxu0 %v84
    %128 = vmatpush1.msra.mxu0 %v83
    %129 = vmatprep.subr.mxu0 %v86
    %130 = vmatpush1.msra.mxu0 %v85
    %131 = vmatprep.subr.mxu0 %v88
    %132 = vmatpush1.msra.mxu0 %v87
    %133 = vmatprep.subr.mxu0 %v90
    %134 = vmatpush1.msra.mxu0 %v89
    %135 = vmatprep.subr.mxu0 %v92
    %136 = vmatpush1.msra.mxu0 %v91
    %137 = vmatprep.subr.mxu0 %v94
    %138 = vmatpush1.msra.mxu0 %v93
    %139 = vmatprep.subr.mxu0 %v96
    %140 = vmatpush1.msra.mxu0 %v95
    %141 = vmatprep.subr.mxu0 %v98
    %142 = vmatpush1.msra.mxu0 %v97
    %143 = vmatprep.subr.mxu0 %v100
    %144 = vmatpush1.msra.mxu0 %v99
    %145 = vmatprep.subr.mxu0 %v102
    %146 = vmatpush1.msra.mxu0 %v101
    %147 = vmatprep.subr.mxu0 %v104
    %148 = vmatpush1.msra.mxu0 %v103
    %149 = vmatprep.subr.mxu0 %v106
    %150 = vmatpush1.msra.mxu0 %v105
    %151 = vmatprep.subr.mxu0 %v108
    %152 = vmatpush1.msra.mxu0 %v107
    %153 = vmatprep.subr.mxu0 %v110
    %154 = vmatpush1.msra.mxu0 %v109
    %155 = vmatprep.subr.mxu0 %v112
    %156 = vmatpush1.msra.mxu0 %v111
    %157 = vmatprep.subr.mxu0 0.0
    %158 = vmatpush1.msra.mxu0 0.0
    %159 = vmatprep.subr.mxu0 0.0
    %160 = vmatpush1.msra.mxu0 0.0
    %161 = vmatprep.subr.mxu0 0.0
    %162 = vmatpush1.msra.mxu0 0.0
    %163 = vmatprep.subr.mxu0 0.0
    %164 = vmatpush1.msra.mxu0 0.0
    %165 = vmatprep.subr.mxu0 0.0
    %166 = vmatpush1.msra.mxu0 0.0
    %167 = vmatprep.subr.mxu0 0.0
    %168 = vmatpush1.msra.mxu0 0.0
    %169 = vmatprep.subr.mxu0 0.0
    %170 = vmatpush1.msra.mxu0 0.0
    %171 = vmatprep.subr.mxu0 0.0
    %172 = vmatpush1.msra.mxu0 0.0
    %173 = vmatprep.subr.mxu0 0.0
    %174 = vmatpush1.msra.mxu0 0.0
    %175 = vmatprep.subr.mxu0 0.0
    %176 = vmatpush1.msra.mxu0 0.0
    %177 = vmatprep.subr.mxu0 0.0
    %178 = vmatpush1.msra.mxu0 0.0
    %179 = vmatprep.subr.mxu0 0.0
    %180 = vmatpush1.msra.mxu0 0.0
    %181 = vmatprep.subr.mxu0 0.0
    %182 = vmatpush1.msra.mxu0 0.0
    %183 = vmatprep.subr.mxu0 0.0
    %184 = vmatpush1.msra.mxu0 0.0
    %185 = vmatprep.subr.mxu0 0.0
    %186 = vmatpush1.msra.mxu0 0.0
    %187 = vmatprep.subr.mxu0 0.0
    %188 = vmatpush1.msra.mxu0 0.0
    %189 = vmatprep.mubr.f32.mxu0 0.0
    %190 = vmatmul.mubr.f32.gmra.mrb[0].mxu0 %v80
    %v191 = vpop.f32.mrb[0].mxu0
    %v192 = vadd.f32 %v118, %v191
    %v193 = vpop.f32.mrb[0].mxu0
    %v194 = vadd.f32 %v122, %v193
    %195 = vdwg.mxu0
    %v196 = vmax.f32 %v192, 0.0
    %v197 = vld [vmem:[#allocation7] sm:$0xff]
    %v198 = vld [vmem:[#allocation7 + $0x8] sm:$0xff]
    %v199 = vld [vmem:[#allocation7 + $0x10] sm:$0xff]
    %v200 = vld [vmem:[#allocation7 + $0x18] sm:$0xff]
    %v201 = vld [vmem:[#allocation7 + $0x20] sm:$0xff]
    %v202 = vld [vmem:[#allocation7 + $0x28] sm:$0xff]
    %v203 = vld [vmem:[#allocation7 + $0x30] sm:$0xff]
    %v204 = vld [vmem:[#allocation7 + $0x38] sm:$0xff]
    %v205 = vld [vmem:[#allocation7 + $0x40] sm:$0xff]
    %v206 = vld [vmem:[#allocation7 + $0x48] sm:$0xff]
    %v207 = vld [vmem:[#allocation7 + $0x50] sm:$0xff]
    %v208 = vld [vmem:[#allocation7 + $0x58] sm:$0xff]
    %v209 = vld [vmem:[#allocation7 + $0x60] sm:$0xff]
    %v210 = vld [vmem:[#allocation7 + $0x68] sm:$0xff]
    %v211 = vld [vmem:[#allocation7 + $0x70] sm:$0xff]
    %v212 = vld [vmem:[#allocation7 + $0x78] sm:$0xff]
    %v213 = vld [vmem:[%s4] sm:$0x1]
    %v215 = vlaneseq
    %v216 = vshrl.u32 %v215, 7
    %v217 = vsub.s32 0, %v216
    %v218 = vrot.slane %v213, %v217
    %220 = vmatprep.subr.mxu0 0.0
    %221 = vmatpush1.msra.mxu0 %v197
    %222 = vmatprep.subr.mxu0 0.0
    %223 = vmatpush1.msra.mxu0 %v198
    %224 = vmatprep.subr.mxu0 0.0
    %225 = vmatpush1.msra.mxu0 %v199
    %226 = vmatprep.subr.mxu0 0.0
    %227 = vmatpush1.msra.mxu0 %v200
    %228 = vmatprep.subr.mxu0 0.0
    %229 = vmatpush1.msra.mxu0 %v201
    %230 = vmatprep.subr.mxu0 0.0
    %231 = vmatpush1.msra.mxu0 %v202
    %232 = vmatprep.subr.mxu0 0.0
    %233 = vmatpush1.msra.mxu0 %v203
    %234 = vmatprep.subr.mxu0 0.0
    %235 = vmatpush1.msra.mxu0 %v204
    %236 = vmatprep.subr.mxu0 0.0
    %237 = vmatpush1.msra.mxu0 %v205
    %238 = vmatprep.subr.mxu0 0.0
    %239 = vmatpush1.msra.mxu0 %v206
    %240 = vmatprep.subr.mxu0 0.0
    %241 = vmatpush1.msra.mxu0 %v207
    %242 = vmatprep.subr.mxu0 0.0
    %243 = vmatpush1.msra.mxu0 %v208
    %244 = vmatprep.subr.mxu0 0.0
    %245 = vmatpush1.msra.mxu0 %v209
    %246 = vmatprep.subr.mxu0 0.0
    %247 = vmatpush1.msra.mxu0 %v210
    %248 = vmatprep.subr.mxu0 0.0
    %249 = vmatpush1.msra.mxu0 %v211
    %250 = vmatprep.subr.mxu0 0.0
    %251 = vmatpush1.msra.mxu0 %v212
    %252 = vmatprep.subr.mxu0 0.0
    %253 = vmatpush1.msra.mxu0 0.0
    %254 = vmatprep.subr.mxu0 0.0
    %255 = vmatpush1.msra.mxu0 0.0
    %256 = vmatprep.subr.mxu0 0.0
    %257 = vmatpush1.msra.mxu0 0.0
    %258 = vmatprep.subr.mxu0 0.0
    %259 = vmatpush1.msra.mxu0 0.0
    %260 = vmatprep.subr.mxu0 0.0
    %261 = vmatpush1.msra.mxu0 0.0
    %262 = vmatprep.subr.mxu0 0.0
    %263 = vmatpush1.msra.mxu0 0.0
    %264 = vmatprep.subr.mxu0 0.0
    %265 = vmatpush1.msra.mxu0 0.0
    %266 = vmatprep.subr.mxu0 0.0
    %267 = vmatpush1.msra.mxu0 0.0
    %268 = vmatprep.subr.mxu0 0.0
    %269 = vmatpush1.msra.mxu0 0.0
    %270 = vmatprep.subr.mxu0 0.0
    %271 = vmatpush1.msra.mxu0 0.0
    %272 = vmatprep.subr.mxu0 0.0
    %273 = vmatpush1.msra.mxu0 0.0
    %274 = vmatprep.subr.mxu0 0.0
    %275 = vmatpush1.msra.mxu0 0.0
    %276 = vmatprep.subr.mxu0 0.0
    %277 = vmatpush1.msra.mxu0 0.0
    %278 = vmatprep.subr.mxu0 0.0
    %279 = vmatpush1.msra.mxu0 0.0
    %280 = vmatprep.subr.mxu0 0.0
    %281 = vmatpush1.msra.mxu0 0.0
    %282 = vmatprep.subr.mxu0 0.0
    %283 = vmatpush1.msra.mxu0 0.0
    %284 = vmatprep.mubr.f32.mxu0 0.0
    %285 = vmatmul.mubr.f32.gmra.mrb[0].mxu0 %v196
    %v286 = vpop.f32.mrb[0].mxu0
    %v287 = vadd.f32 %v218, %v286
    %v288 = vpop.f32.mrb[0].mxu0
    %289 = vdwg.mxu0
    %v290 = vlaneseq
    %v291 = vshrl.u32 %v290, 7
    %vm292 = vcmp.lt.s32.totalorder %v291, 8
    %v293 = vsel %vm292, %v287, 0.0
    %294 = vadd.xlane.f32.xlu0 %v293
    %v295 = vpop.xlane.xlu0 %294
    %v296 = vrot.slane %v295, 4
    %v297 = vadd.f32 %v295, %v296
    %v298 = vrot.slane %v297, 2
    %v299 = vadd.f32 %v297, %v298
    %v300 = vrot.slane %v299, 1
    %v301 = vadd.f32 %v299, %v300
    %s302 = vtos %v301
    %s303 = smul.f32 %s302, 0.0078125
    %v304 = vlaneseq
    %v305 = vand.u32 %v304, 127
    %vm306 = vcmp.lt.s32.totalorder %v305, 32
    %v307 = vsel %vm306, 1, 0
    %v308 = vcvt.s32.f32 %v307
    %vm309 = vcmp.lt.s32.totalorder %v305, 16
    %v310 = vsel %vm309, 1, 0
    %v311 = vcvt.s32.f32 %v310
    %312 = vadd.xlane.f32.xlu0 %v80
    %v313 = vpop.xlane.xlu0 %312
    %v314 = vstv %s303
    %v315 = vmul.f32 %v314, %v313
    %v316 = vadd.f32 %v315, %v314
    %v317 = vmul.f32 %v316, %v308
    %v318 = vadd.f32 %v194, %v317
    %v319 = vmax.f32 %v318, 0.0
    %320 = vadd.xlane.f32.xlu0 %v319
    %v321 = vpop.xlane.xlu0 %320
    %v322 = vld [vmem:[#allocation8] sm:$0xff]
    %v323 = vld [vmem:[#allocation8 + $0x8] sm:$0xff]
    %v324 = vld [vmem:[#allocation8 + $0x10] sm:$0xff]
    %v325 = vld [vmem:[#allocation8 + $0x18] sm:$0xff]
    %v326 = vld [vmem:[#allocation8 + $0x20] sm:$0xff]
    %v327 = vld [vmem:[#allocation8 + $0x28] sm:$0xff]
    %v328 = vld [vmem:[#allocation8 + $0x30] sm:$0xff]
    %v329 = vld [vmem:[#allocation8 + $0x38] sm:$0xff]
    %v330 = vld [vmem:[#allocation8 + $0x40] sm:$0xff]
    %v331 = vld [vmem:[#allocation8 + $0x48] sm:$0xff]
    %v332 = vld [vmem:[#allocation8 + $0x50] sm:$0xff]
    %v333 = vld [vmem:[#allocation8 + $0x58] sm:$0xff]
    %v334 = vld [vmem:[#allocation8 + $0x60] sm:$0xff]
    %v335 = vld [vmem:[#allocation8 + $0x68] sm:$0xff]
    %v336 = vld [vmem:[#allocation8 + $0x70] sm:$0xff]
    %v337 = vld [vmem:[#allocation8 + $0x78] sm:$0xff]
    %v338 = vld [vmem:[%s6] sm:$0x1]
    %v340 = vlaneseq
    %v341 = vshrl.u32 %v340, 7
    %v342 = vsub.s32 0, %v341
    %v343 = vrot.slane %v338, %v342
    %345 = vmatprep.subr.mxu0 0.0
    %346 = vmatpush1.msra.mxu0 %v322
    %347 = vmatprep.subr.mxu0 0.0
    %348 = vmatpush1.msra.mxu0 %v323
    %349 = vmatprep.subr.mxu0 0.0
    %350 = vmatpush1.msra.mxu0 %v324
    %351 = vmatprep.subr.mxu0 0.0
    %352 = vmatpush1.msra.mxu0 %v325
    %353 = vmatprep.subr.mxu0 0.0
    %354 = vmatpush1.msra.mxu0 %v326
    %355 = vmatprep.subr.mxu0 0.0
    %356 = vmatpush1.msra.mxu0 %v327
    %357 = vmatprep.subr.mxu0 0.0
    %358 = vmatpush1.msra.mxu0 %v328
    %359 = vmatprep.subr.mxu0 0.0
    %360 = vmatpush1.msra.mxu0 %v329
    %361 = vmatprep.subr.mxu0 0.0
    %362 = vmatpush1.msra.mxu0 %v330
    %363 = vmatprep.subr.mxu0 0.0
    %364 = vmatpush1.msra.mxu0 %v331
    %365 = vmatprep.subr.mxu0 0.0
    %366 = vmatpush1.msra.mxu0 %v332
    %367 = vmatprep.subr.mxu0 0.0
    %368 = vmatpush1.msra.mxu0 %v333
    %369 = vmatprep.subr.mxu0 0.0
    %370 = vmatpush1.msra.mxu0 %v334
    %371 = vmatprep.subr.mxu0 0.0
    %372 = vmatpush1.msra.mxu0 %v335
    %373 = vmatprep.subr.mxu0 0.0
    %374 = vmatpush1.msra.mxu0 %v336
    %375 = vmatprep.subr.mxu0 0.0
    %376 = vmatpush1.msra.mxu0 %v337
    %377 = vmatprep.subr.mxu0 0.0
    %378 = vmatpush1.msra.mxu0 0.0
    %379 = vmatprep.subr.mxu0 0.0
    %380 = vmatpush1.msra.mxu0 0.0
    %381 = vmatprep.subr.mxu0 0.0
    %382 = vmatpush1.msra.mxu0 0.0
    %383 = vmatprep.subr.mxu0 0.0
    %384 = vmatpush1.msra.mxu0 0.0
    %385 = vmatprep.subr.mxu0 0.0
    %386 = vmatpush1.msra.mxu0 0.0
    %387 = vmatprep.subr.mxu0 0.0
    %388 = vmatpush1.msra.mxu0 0.0
    %389 = vmatprep.subr.mxu0 0.0
    %390 = vmatpush1.msra.mxu0 0.0
    %391 = vmatprep.subr.mxu0 0.0
    %392 = vmatpush1.msra.mxu0 0.0
    %393 = vmatprep.subr.mxu0 0.0
    %394 = vmatpush1.msra.mxu0 0.0
    %395 = vmatprep.subr.mxu0 0.0
    %396 = vmatpush1.msra.mxu0 0.0
    %397 = vmatprep.subr.mxu0 0.0
    %398 = vmatpush1.msra.mxu0 0.0
    %399 = vmatprep.subr.mxu0 0.0
    %400 = vmatpush1.msra.mxu0 0.0
    %401 = vmatprep.subr.mxu0 0.0
    %402 = vmatpush1.msra.mxu0 0.0
    %403 = vmatprep.subr.mxu0 0.0
    %404 = vmatpush1.msra.mxu0 0.0
    %405 = vmatprep.subr.mxu0 0.0
    %406 = vmatpush1.msra.mxu0 0.0
    %407 = vmatprep.subr.mxu0 0.0
    %408 = vmatpush1.msra.mxu0 0.0
    %409 = vmatprep.mubr.f32.mxu0 0.0
    %410 = vmatmul.mubr.f32.gmra.mrb[0].mxu0 %v319
    %v411 = vpop.f32.mrb[0].mxu0
    %v412 = vadd.f32 %v343, %v411
    %v413 = vpop.f32.mrb[0].mxu0
    %414 = vdwg.mxu0
    %v415 = vmul.f32 %v314, %v321
    %v416 = vadd.f32 %v415, %v314
    %v417 = vmul.f32 %v416, %v311
    %v418 = vadd.f32 %v412, %v417
    %419 = vst [vmem:[#allocation10] sm:$0xff] %v418
    // Predicated region
    $region46: #{tpu_custom_call.1} parent=1 // pred_check
      _
    $region47: #{tpu_custom_call.1} parent=1 // pred_check_branch
      %421 = sbr.rel (0) target = $region49
    $region48: #{tpu_custom_call.1} parent=1 // pred_region
      %s423 = ssub.s32 128, 128
      %424 = vsyncadd [#allocation4], %s423
      %s426 = sshll.u32 [#allocation10], 4
      %s427 = int_to_ptr.vmem [resolvable:$true] %s426
      %429 = dma.vmem_to_hbm [thread:$0]  %s427, 128, %s7, [#allocation4]
    $region49: #{tpu_custom_call.1} parent=1 // pred_fallthru
      _
    // Predicated region
    $region50: #{tpu_custom_call.1} parent=1 // pred_check
      _
    $region51: #{tpu_custom_call.1} parent=1 // pred_check_branch
      %431 = sbr.rel (0) target = $region53
    $region52: #{tpu_custom_call.1} parent=1 // pred_region
      %432 = dma.done [#allocation4], 128
    $region53: #{tpu_custom_call.1} parent=1 // pred_fallthru
      _
    %433 = vsyncpa [#allocation3], 1
    %434 = vsyncpa [#allocation6], 1
    %435 = vsyncpa [#allocation9], 1
    %436 = vsyncpa [#allocation4], 1

</llo_original>
